<compile_context>
chip_gen: v5e
topology: v5e:2x2
jax: 0.10.0
libtpu: 0.0.40
codegen_flags: <defaults>
</compile_context>

<pallas_src>
import functools

import jax
import jax.numpy as jnp
from jax import lax
from jax.experimental import pallas as pl
from jax.experimental.pallas import tpu as pltpu

_COS_EPS = 1e-8    # F.cosine_similarity default eps
_CLS_EPS = 1e-10   # ContrastiveClasifier.eps


def _contrastive_kernel(x1_ref, x2_ref, x3_ref, x4_ref,
                        x5_ref, x6_ref, x7_ref, x8_ref,
                        out_ref, *, w):
    """One (TB, D) row-tile per input; output tile is (TB, 1)."""
    f32 = jnp.float32
    x1 = x1_ref[...].astype(f32); x2 = x2_ref[...].astype(f32)
    x3 = x3_ref[...].astype(f32); x4 = x4_ref[...].astype(f32)
    x5 = x5_ref[...].astype(f32); x6 = x6_ref[...].astype(f32)
    x7 = x7_ref[...].astype(f32); x8 = x8_ref[...].astype(f32)

    def cosine_distance(a0, b0, a1, b1):
        # Cosine distance of the concatenated vectors [a0|a1] vs [b0|b1].
        # The two halves have identical (TB, D) shapes, so fuse them before
        # the lane reduction (halves the XLU reduction count).
        dot = jnp.sum(a0 * b0 + a1 * b1, axis=-1, keepdims=True)
        sa = jnp.sum(a0 * a0 + a1 * a1, axis=-1, keepdims=True)
        sb = jnp.sum(b0 * b0 + b1 * b1, axis=-1, keepdims=True)
        # dot / max(sqrt(sa*sb), eps)  ==  dot * rsqrt(max(sa*sb, eps^2))
        cos = dot * lax.rsqrt(jnp.maximum(sa * sb, _COS_EPS * _COS_EPS))
        # Hardening: rounding can push cos slightly outside [-1, 1]; cos < -1
        # would make (1+cos)/2 negative and the log NaN.
        cos = jnp.clip(cos, -1.0, 1.0)
        return -jnp.log((1.0 + cos) * 0.5)

    dist_t = cosine_distance(x1, x2, x5, x6)     # time branch  [x1|x5] vs [x2|x6]
    dist_f = cosine_distance(x3, x4, x7, x8)     # fft  branch  [x3|x7] vs [x4|x8]

    dists = jnp.maximum(dist_t, w * dist_f)                       # (TB, 1)
    log_prob_equal = -dists
    prob_different = jnp.clip(1.0 - jnp.exp(log_prob_equal), _CLS_EPS, 1.0)
    out_ref[...] = jnp.log(prob_different) - log_prob_equal


def _round_up(x, m):
    return ((x + m - 1) // m) * m


def _vmem_capacity_bytes():
    """Per-TensorCore VMEM capacity; conservative (v7x-class) fallback."""
    try:
        return int(pltpu.get_tpu_info().vmem_capacity_bytes)
    except Exception:
        return 64 * 1024 * 1024


def _budgets():
    """(double-buffered scratch budget, vmem_limit_bytes) per generation."""
    cap = _vmem_capacity_bytes()
    if cap <= 64 * 1024 * 1024:            # v7x-class: 64 MiB VMEM per TC
        return 40 * 1024 * 1024, 48 * 1024 * 1024
    return 64 * 1024 * 1024, 96 * 1024 * 1024   # v5e / v6e: 128 MiB VMEM


def _pick_row_tile(B, D, itemsizes, buf_budget):
    """Largest 8-aligned row tile whose double-buffered blocks fit the budget."""
    d_pad = _round_up(max(D, 1), 128)                 # lane-padded VMEM width
    bytes_per_row = sum(2 * d_pad * it for it in itemsizes)   # 2x-buffered inputs
    bytes_per_row += 2 * 128 * 4                      # 2x-buffered (TB, 1) f32 output
    tb = max(8, (buf_budget // bytes_per_row) // 8 * 8)
    return int(min(tb, _round_up(B, 8)))              # never exceed (8-rounded) batch


def contrastive_classifier(x1, x2, x3, x4, x5, x6, x7, x8, weight_fft_branch):
    """JAX wrapper reproducing ContrastiveClasifier.forward -> (B, 1) logits."""
    xs = (x1, x2, x3, x4, x5, x6, x7, x8)
    B, D = xs[0].shape

    buf_budget, vmem_limit = _budgets()
    itemsizes = [jnp.dtype(x.dtype).itemsize for x in xs]
    TB = _pick_row_tile(B, D, itemsizes, buf_budget)
    G = pl.cdiv(B, TB)   # last block may be partial: Pallas clips reads/writes

    in_spec = pl.BlockSpec((TB, D), lambda i: (i, 0))
    out_spec = pl.BlockSpec((TB, 1), lambda i: (i, 0))

    kernel = functools.partial(_contrastive_kernel, w=float(weight_fft_branch))

    return pl.pallas_call(
        kernel,
        out_shape=jax.ShapeDtypeStruct((B, 1), jnp.float32),
        grid=(G,),
        in_specs=[in_spec] * 8,
        out_specs=out_spec,
        compiler_params=pltpu.CompilerParams(
            dimension_semantics=("parallel",),   # rows are independent
            vmem_limit_bytes=int(vmem_limit),
        ),
    )(*xs)


def _reference(x1, x2, x3, x4, x5, x6, x7, x8, w):
    """Pure-JAX reference (mirrors the PyTorch math) for a sanity check."""
    def cos_dist(a, b):
        dot = jnp.sum(a * b, axis=-1, keepdims=True)
        na = jnp.linalg.norm(a, axis=-1, keepdims=True)
        nb = jnp.linalg.norm(b, axis=-1, keepdims=True)
        cos = dot / jnp.maximum(na * nb, _COS_EPS)
        return -jnp.log((1.0 + cos) / 2.0)

    xt = jnp.concatenate((x1, x5), -1); yt = jnp.concatenate((x2, x6), -1)
    xf = jnp.concatenate((x3, x7), -1); yf = jnp.concatenate((x4, x8), -1)
    dists = jnp.maximum(cos_dist(xt, yt), w * cos_dist(xf, yf))
    prob_diff = jnp.clip(1.0 - jnp.exp(-dists), _CLS_EPS, 1.0)
    return jnp.log(prob_diff) + dists


if __name__ == "__main__":
    D = 32
    weight_fft_branch = 0.5

    # 1) Small batch (typical TFAD embedding batch), f32.
    B = 8
    keys = jax.random.split(jax.random.PRNGKey(0), 8)
    xs = [jax.random.normal(k, (B, D), dtype=jnp.float32) for k in keys]
    out = jax.block_until_ready(contrastive_classifier(*xs, weight_fft_branch))
    ref = _reference(*xs, weight_fft_branch)
    assert out.shape == (B, 1)
    assert jnp.allclose(out, ref, rtol=1e-5, atol=1e-5), "mismatch (small batch)"

    # 2) Large batch: multiple grid steps + ragged (partial) last block.
    B2 = 10000
    keys2 = jax.random.split(jax.random.PRNGKey(1), 8)
    xs2 = [jax.random.normal(k, (B2, D), dtype=jnp.float32) for k in keys2]
    out2 = jax.block_until_ready(contrastive_classifier(*xs2, weight_fft_branch))
    ref2 = _reference(*xs2, weight_fft_branch)
    assert out2.shape == (B2, 1)
    assert jnp.allclose(out2, ref2, rtol=1e-5, atol=1e-5), "mismatch (large batch)"

    # 3) Ragged tiny batch, native bf16 inputs (in-kernel upcast path).
    B3 = 37
    keys3 = jax.random.split(jax.random.PRNGKey(2), 8)
    xs3 = [jax.random.normal(k, (B3, D), dtype=jnp.bfloat16) for k in keys3]
    out3 = jax.block_until_ready(contrastive_classifier(*xs3, weight_fft_branch))
    ref3 = _reference(*[x.astype(jnp.float32) for x in xs3], weight_fft_branch)
    assert out3.shape == (B3, 1)
    assert jnp.allclose(out3, ref3, rtol=1e-5, atol=1e-5), "mismatch (bf16 ragged)"

    print("KERNEL_OK")
</pallas_src>

<mosaic_0001>
module attributes {stable_mosaic.version = 11 : i64} {
  func.func @_contrastive_kernel(%arg0: i32, %arg1: memref<8x32xf32, #tpu.memory_space<vmem>>, %arg2: memref<8x32xf32, #tpu.memory_space<vmem>>, %arg3: memref<8x32xf32, #tpu.memory_space<vmem>>, %arg4: memref<8x32xf32, #tpu.memory_space<vmem>>, %arg5: memref<8x32xf32, #tpu.memory_space<vmem>>, %arg6: memref<8x32xf32, #tpu.memory_space<vmem>>, %arg7: memref<8x32xf32, #tpu.memory_space<vmem>>, %arg8: memref<8x32xf32, #tpu.memory_space<vmem>>, %arg9: memref<8x1xf32, #tpu.memory_space<vmem>>) attributes {dimension_semantics = [#tpu.dimension_semantics<parallel>], iteration_bounds = array<i64: 1>, scalar_prefetch = 0 : i64, scratch_operands = 0 : i64, tpu.core_type = #tpu.core_type<tc>, window_params = [{transform_indices = @transform_0, window_bounds = array<i64: 8, 32>}, {transform_indices = @transform_1, window_bounds = array<i64: 8, 32>}, {transform_indices = @transform_2, window_bounds = array<i64: 8, 32>}, {transform_indices = @transform_3, window_bounds = array<i64: 8, 32>}, {transform_indices = @transform_4, window_bounds = array<i64: 8, 32>}, {transform_indices = @transform_5, window_bounds = array<i64: 8, 32>}, {transform_indices = @transform_6, window_bounds = array<i64: 8, 32>}, {transform_indices = @transform_7, window_bounds = array<i64: 8, 32>}, {transform_indices = @transform_8, window_bounds = array<i64: 8, 1>}]} {
    %c0 = arith.constant 0 : index
    %c0_0 = arith.constant 0 : index
    %0 = vector.load %arg1[%c0, %c0_0] : memref<8x32xf32, #tpu.memory_space<vmem>>, vector<8x32xf32>
    %c0_1 = arith.constant 0 : index
    %c0_2 = arith.constant 0 : index
    %1 = vector.load %arg2[%c0_1, %c0_2] : memref<8x32xf32, #tpu.memory_space<vmem>>, vector<8x32xf32>
    %c0_3 = arith.constant 0 : index
    %c0_4 = arith.constant 0 : index
    %2 = vector.load %arg3[%c0_3, %c0_4] : memref<8x32xf32, #tpu.memory_space<vmem>>, vector<8x32xf32>
    %c0_5 = arith.constant 0 : index
    %c0_6 = arith.constant 0 : index
    %3 = vector.load %arg4[%c0_5, %c0_6] : memref<8x32xf32, #tpu.memory_space<vmem>>, vector<8x32xf32>
    %c0_7 = arith.constant 0 : index
    %c0_8 = arith.constant 0 : index
    %4 = vector.load %arg5[%c0_7, %c0_8] : memref<8x32xf32, #tpu.memory_space<vmem>>, vector<8x32xf32>
    %c0_9 = arith.constant 0 : index
    %c0_10 = arith.constant 0 : index
    %5 = vector.load %arg6[%c0_9, %c0_10] : memref<8x32xf32, #tpu.memory_space<vmem>>, vector<8x32xf32>
    %c0_11 = arith.constant 0 : index
    %c0_12 = arith.constant 0 : index
    %6 = vector.load %arg7[%c0_11, %c0_12] : memref<8x32xf32, #tpu.memory_space<vmem>>, vector<8x32xf32>
    %c0_13 = arith.constant 0 : index
    %c0_14 = arith.constant 0 : index
    %7 = vector.load %arg8[%c0_13, %c0_14] : memref<8x32xf32, #tpu.memory_space<vmem>>, vector<8x32xf32>
    %8 = arith.mulf %0, %1 : vector<8x32xf32>
    %9 = arith.mulf %4, %5 : vector<8x32xf32>
    %10 = arith.addf %8, %9 : vector<8x32xf32>
    %cst = arith.constant dense<0.000000e+00> : vector<8xf32>
    %11 = vector.multi_reduction <add>, %10, %cst [1] : vector<8x32xf32> to vector<8xf32>
    %12 = vector.shape_cast %11 : vector<8xf32> to vector<8x1xf32>
    %13 = arith.mulf %0, %0 : vector<8x32xf32>
    %14 = arith.mulf %4, %4 : vector<8x32xf32>
    %15 = arith.addf %13, %14 : vector<8x32xf32>
    %cst_15 = arith.constant dense<0.000000e+00> : vector<8xf32>
    %16 = vector.multi_reduction <add>, %15, %cst_15 [1] : vector<8x32xf32> to vector<8xf32>
    %17 = vector.shape_cast %16 : vector<8xf32> to vector<8x1xf32>
    %18 = arith.mulf %1, %1 : vector<8x32xf32>
    %19 = arith.mulf %5, %5 : vector<8x32xf32>
    %20 = arith.addf %18, %19 : vector<8x32xf32>
    %cst_16 = arith.constant dense<0.000000e+00> : vector<8xf32>
    %21 = vector.multi_reduction <add>, %20, %cst_16 [1] : vector<8x32xf32> to vector<8xf32>
    %22 = vector.shape_cast %21 : vector<8xf32> to vector<8x1xf32>
    %23 = arith.mulf %17, %22 : vector<8x1xf32>
    %cst_17 = arith.constant 1.000000e-16 : f32
    %24 = vector.broadcast %cst_17 : f32 to vector<8x1xf32>
    %25 = arith.maximumf %23, %24 : vector<8x1xf32>
    %26 = math.rsqrt %25 : vector<8x1xf32>
    %27 = arith.mulf %12, %26 : vector<8x1xf32>
    %cst_18 = arith.constant -1.000000e+00 : f32
    %cst_19 = arith.constant 1.000000e+00 : f32
    %28 = vector.broadcast %cst_18 : f32 to vector<8x1xf32>
    %29 = arith.maximumf %28, %27 : vector<8x1xf32>
    %30 = vector.broadcast %cst_19 : f32 to vector<8x1xf32>
    %31 = arith.minimumf %30, %29 : vector<8x1xf32>
    %cst_20 = arith.constant 1.000000e+00 : f32
    %32 = vector.broadcast %cst_20 : f32 to vector<8x1xf32>
    %33 = arith.addf %32, %31 : vector<8x1xf32>
    %cst_21 = arith.constant 5.000000e-01 : f32
    %34 = vector.broadcast %cst_21 : f32 to vector<8x1xf32>
    %35 = arith.mulf %33, %34 : vector<8x1xf32>
    %36 = math.log %35 : vector<8x1xf32>
    %cst_22 = arith.constant 0.000000e+00 : f32
    %37 = vector.broadcast %cst_22 : f32 to vector<8x1xf32>
    %38 = arith.subf %37, %36 : vector<8x1xf32>
    %39 = arith.mulf %2, %3 : vector<8x32xf32>
    %40 = arith.mulf %6, %7 : vector<8x32xf32>
    %41 = arith.addf %39, %40 : vector<8x32xf32>
    %cst_23 = arith.constant dense<0.000000e+00> : vector<8xf32>
    %42 = vector.multi_reduction <add>, %41, %cst_23 [1] : vector<8x32xf32> to vector<8xf32>
    %43 = vector.shape_cast %42 : vector<8xf32> to vector<8x1xf32>
    %44 = arith.mulf %2, %2 : vector<8x32xf32>
    %45 = arith.mulf %6, %6 : vector<8x32xf32>
    %46 = arith.addf %44, %45 : vector<8x32xf32>
    %cst_24 = arith.constant dense<0.000000e+00> : vector<8xf32>
    %47 = vector.multi_reduction <add>, %46, %cst_24 [1] : vector<8x32xf32> to vector<8xf32>
    %48 = vector.shape_cast %47 : vector<8xf32> to vector<8x1xf32>
    %49 = arith.mulf %3, %3 : vector<8x32xf32>
    %50 = arith.mulf %7, %7 : vector<8x32xf32>
    %51 = arith.addf %49, %50 : vector<8x32xf32>
    %cst_25 = arith.constant dense<0.000000e+00> : vector<8xf32>
    %52 = vector.multi_reduction <add>, %51, %cst_25 [1] : vector<8x32xf32> to vector<8xf32>
    %53 = vector.shape_cast %52 : vector<8xf32> to vector<8x1xf32>
    %54 = arith.mulf %48, %53 : vector<8x1xf32>
    %cst_26 = arith.constant 1.000000e-16 : f32
    %55 = vector.broadcast %cst_26 : f32 to vector<8x1xf32>
    %56 = arith.maximumf %54, %55 : vector<8x1xf32>
    %57 = math.rsqrt %56 : vector<8x1xf32>
    %58 = arith.mulf %43, %57 : vector<8x1xf32>
    %cst_27 = arith.constant -1.000000e+00 : f32
    %cst_28 = arith.constant 1.000000e+00 : f32
    %59 = vector.broadcast %cst_27 : f32 to vector<8x1xf32>
    %60 = arith.maximumf %59, %58 : vector<8x1xf32>
    %61 = vector.broadcast %cst_28 : f32 to vector<8x1xf32>
    %62 = arith.minimumf %61, %60 : vector<8x1xf32>
    %cst_29 = arith.constant 1.000000e+00 : f32
    %63 = vector.broadcast %cst_29 : f32 to vector<8x1xf32>
    %64 = arith.addf %63, %62 : vector<8x1xf32>
    %cst_30 = arith.constant 5.000000e-01 : f32
    %65 = vector.broadcast %cst_30 : f32 to vector<8x1xf32>
    %66 = arith.mulf %64, %65 : vector<8x1xf32>
    %67 = math.log %66 : vector<8x1xf32>
    %cst_31 = arith.constant 0.000000e+00 : f32
    %68 = vector.broadcast %cst_31 : f32 to vector<8x1xf32>
    %69 = arith.subf %68, %67 : vector<8x1xf32>
    %cst_32 = arith.constant 5.000000e-01 : f32
    %70 = vector.broadcast %cst_32 : f32 to vector<8x1xf32>
    %71 = arith.mulf %70, %69 : vector<8x1xf32>
    %72 = arith.maximumf %38, %71 : vector<8x1xf32>
    %cst_33 = arith.constant 0.000000e+00 : f32
    %73 = vector.broadcast %cst_33 : f32 to vector<8x1xf32>
    %74 = arith.subf %73, %72 : vector<8x1xf32>
    %75 = math.exp %74 : vector<8x1xf32>
    %cst_34 = arith.constant 1.000000e+00 : f32
    %76 = vector.broadcast %cst_34 : f32 to vector<8x1xf32>
    %77 = arith.subf %76, %75 : vector<8x1xf32>
    %cst_35 = arith.constant 1.000000e-10 : f32
    %cst_36 = arith.constant 1.000000e+00 : f32
    %78 = vector.broadcast %cst_35 : f32 to vector<8x1xf32>
    %79 = arith.maximumf %78, %77 : vector<8x1xf32>
    %80 = vector.broadcast %cst_36 : f32 to vector<8x1xf32>
    %81 = arith.minimumf %80, %79 : vector<8x1xf32>
    %82 = math.log %81 : vector<8x1xf32>
    %83 = arith.subf %82, %74 : vector<8x1xf32>
    %c0_37 = arith.constant 0 : index
    %c0_38 = arith.constant 0 : index
    %84 = vector.load %arg9[%c0_37, %c0_38] : memref<8x1xf32, #tpu.memory_space<vmem>>, vector<8x1xf32>
    tpu.vector_store %arg9[%c0_37, %c0_38], %83 {strides = array<i32>} : memref<8x1xf32, #tpu.memory_space<vmem>>, vector<8x1xf32>,
    return
  }
  func.func @transform_0(%arg0: i32) -> (i32, i32) {
    %c0_i32 = arith.constant 0 : i32
    %c0_i32_0 = arith.constant 0 : i32
    return %arg0, %c0_i32 : i32, i32
  }
  func.func @transform_1(%arg0: i32) -> (i32, i32) {
    %c0_i32 = arith.constant 0 : i32
    %c0_i32_0 = arith.constant 0 : i32
    return %arg0, %c0_i32 : i32, i32
  }
  func.func @transform_2(%arg0: i32) -> (i32, i32) {
    %c0_i32 = arith.constant 0 : i32
    %c0_i32_0 = arith.constant 0 : i32
    return %arg0, %c0_i32 : i32, i32
  }
  func.func @transform_3(%arg0: i32) -> (i32, i32) {
    %c0_i32 = arith.constant 0 : i32
    %c0_i32_0 = arith.constant 0 : i32
    return %arg0, %c0_i32 : i32, i32
  }
  func.func @transform_4(%arg0: i32) -> (i32, i32) {
    %c0_i32 = arith.constant 0 : i32
    %c0_i32_0 = arith.constant 0 : i32
    return %arg0, %c0_i32 : i32, i32
  }
  func.func @transform_5(%arg0: i32) -> (i32, i32) {
    %c0_i32 = arith.constant 0 : i32
    %c0_i32_0 = arith.constant 0 : i32
    return %arg0, %c0_i32 : i32, i32
  }
  func.func @transform_6(%arg0: i32) -> (i32, i32) {
    %c0_i32 = arith.constant 0 : i32
    %c0_i32_0 = arith.constant 0 : i32
    return %arg0, %c0_i32 : i32, i32
  }
  func.func @transform_7(%arg0: i32) -> (i32, i32) {
    %c0_i32 = arith.constant 0 : i32
    %c0_i32_0 = arith.constant 0 : i32
    return %arg0, %c0_i32 : i32, i32
  }
  func.func @transform_8(%arg0: i32) -> (i32, i32) {
    %c0_i32 = arith.constant 0 : i32
    %c0_i32_0 = arith.constant 0 : i32
    return %arg0, %c0_i32 : i32, i32
  }
}

</mosaic_0001>

<llo_original>
// kernel: tpu_custom_call.1
$region0: #{tpu_custom_call.1}
  #allocation0 [shape = 'u32[]', space=smem, size = 0x4, offset = 0x4, fixed_abs, tag = 'smem constant byte address 0x4 - core index']
  #allocation1 [shape = 'u32[72,128]{1,0:T(1,128)}', space=vmem, size = 0x9000, scoped, tag = 'internal scratch']
  %s0 = inlined_call_operand.hbm [shape: f32[8,32], index: 0, kind: input, shape index: {}]
  %s1 = inlined_call_operand.hbm [shape: f32[8,32], index: 1, kind: input, shape index: {}]
  %s2 = inlined_call_operand.hbm [shape: f32[8,32], index: 2, kind: input, shape index: {}]
  %s3 = inlined_call_operand.hbm [shape: f32[8,32], index: 3, kind: input, shape index: {}]
  %s4 = inlined_call_operand.hbm [shape: f32[8,32], index: 4, kind: input, shape index: {}]
  %s5 = inlined_call_operand.hbm [shape: f32[8,32], index: 5, kind: input, shape index: {}]
  %s6 = inlined_call_operand.hbm [shape: f32[8,32], index: 6, kind: input, shape index: {}]
  %s7 = inlined_call_operand.hbm [shape: f32[8,32], index: 7, kind: input, shape index: {}]
  %s8 = inlined_call_operand.vmem [shape: f32[8,1], index: 8, kind: output, shape index: {}]
  %s9 = sld [smem:[#allocation0]]
  $region74: #{tpu_custom_call.1} parent=0
    _
  %s11 = ssub.s32 1, %s9
  %s12 = scalar_select 0, %s11, %s9
  $region1: #{tpu_custom_call.1} parent=0
    #allocation2 [shape = 'u8[4096]{0}', space=vmem, size = 0x1000, scoped, tag = 'input window, operand 0, single buffered']
    #allocation3 [shape = 's32[1]{0}', space=sflag, size = 0x4, scoped, tag = 'scoped memory for tpu_custom_call.1']
    #allocation4 [shape = 'u8[4096]{0}', space=vmem, size = 0x1000, scoped, tag = 'input window, operand 1, single buffered']
    #allocation5 [shape = 's32[1]{0}', space=sflag, size = 0x4, scoped, tag = 'scoped memory for tpu_custom_call.1']
    #allocation6 [shape = 'u8[4096]{0}', space=vmem, size = 0x1000, scoped, tag = 'input window, operand 2, single buffered']
    #allocation7 [shape = 'u8[4096]{0}', space=vmem, size = 0x1000, scoped, tag = 'input window, operand 3, single buffered']
    #allocation8 [shape = 's32[1]{0}', space=sflag, size = 0x4, scoped, tag = 'scoped memory for tpu_custom_call.1']
    #allocation9 [shape = 'u8[4096]{0}', space=vmem, size = 0x1000, scoped, tag = 'input window, operand 4, single buffered']
    #allocation10 [shape = 'u8[4096]{0}', space=vmem, size = 0x1000, scoped, tag = 'input window, operand 5, single buffered']
    #allocation11 [shape = 's32[1]{0}', space=sflag, size = 0x4, scoped, tag = 'scoped memory for tpu_custom_call.1']
    #allocation12 [shape = 'u8[4096]{0}', space=vmem, size = 0x1000, scoped, tag = 'input window, operand 6, single buffered']
    #allocation13 [shape = 'u8[4096]{0}', space=vmem, size = 0x1000, scoped, tag = 'input window, operand 7, single buffered']
    #allocation14 [shape = 's32[1]{0}', space=sflag, size = 0x4, scoped, tag = 'scoped memory for tpu_custom_call.1']
    %13 = vsyncpa [#allocation3], 0
    %14 = vsyncpa [#allocation5], 0
    %15 = vsyncpa [#allocation8], 0
    %16 = vsyncpa [#allocation11], 0
    %17 = vsyncpa [#allocation14], 0
    // Predicated region
    $region2: #{tpu_custom_call.1} parent=1 // pred_check
      _
    $region3: #{tpu_custom_call.1} parent=1 // pred_check_branch
      %19 = sbr.rel (0) target = $region5
    $region4: #{tpu_custom_call.1} parent=1 // pred_region
      %21 = vsyncadd [#allocation3], 0
      %s23 = sshll.u32 %s0, 4
      %s24 = int_to_ptr.hbm [resolvable:$true] %s23
      %s25 = sshll.u32 [#allocation2], 4
      %s26 = int_to_ptr.vmem [resolvable:$true] %s25
      %28 = dma.hbm_to_vmem [thread:$0]  %s24, 128, %s26, [#allocation3]
    $region5: #{tpu_custom_call.1} parent=1 // pred_fallthru
      _
    // Predicated region
    $region6: #{tpu_custom_call.1} parent=1 // pred_check
      _
    $region7: #{tpu_custom_call.1} parent=1 // pred_check_branch
      %30 = sbr.rel (0) target = $region9
    $region8: #{tpu_custom_call.1} parent=1 // pred_region
      %32 = vsyncadd [#allocation5], 0
      %s34 = sshll.u32 %s1, 4
      %s35 = int_to_ptr.hbm [resolvable:$true] %s34
      %s36 = sshll.u32 [#allocation4], 4
      %s37 = int_to_ptr.vmem [resolvable:$true] %s36
      %39 = dma.hbm_to_vmem [thread:$0]  %s35, 128, %s37, [#allocation5]
    $region9: #{tpu_custom_call.1} parent=1 // pred_fallthru
      _
    // Predicated region
    $region10: #{tpu_custom_call.1} parent=1 // pred_check
      _
    $region11: #{tpu_custom_call.1} parent=1 // pred_check_branch
      %41 = sbr.rel (0) target = $region13
    $region12: #{tpu_custom_call.1} parent=1 // pred_region
      %43 = vsyncadd [#allocation5], 0
      %s45 = sshll.u32 %s2, 4
      %s46 = int_to_ptr.hbm [resolvable:$true] %s45
      %s47 = sshll.u32 [#allocation6], 4
      %s48 = int_to_ptr.vmem [resolvable:$true] %s47
      %50 = dma.hbm_to_vmem [thread:$0]  %s46, 128, %s48, [#allocation5]
    $region13: #{tpu_custom_call.1} parent=1 // pred_fallthru
      _
    // Predicated region
    $region14: #{tpu_custom_call.1} parent=1 // pred_check
      _
    $region15: #{tpu_custom_call.1} parent=1 // pred_check_branch
      %52 = sbr.rel (0) target = $region17
    $region16: #{tpu_custom_call.1} parent=1 // pred_region
      %54 = vsyncadd [#allocation8], 0
      %s56 = sshll.u32 %s3, 4
      %s57 = int_to_ptr.hbm [resolvable:$true] %s56
      %s58 = sshll.u32 [#allocation7], 4
      %s59 = int_to_ptr.vmem [resolvable:$true] %s58
      %61 = dma.hbm_to_vmem [thread:$0]  %s57, 128, %s59, [#allocation8]
    $region17: #{tpu_custom_call.1} parent=1 // pred_fallthru
      _
    // Predicated region
    $region18: #{tpu_custom_call.1} parent=1 // pred_check
      _
    $region19: #{tpu_custom_call.1} parent=1 // pred_check_branch
      %63 = sbr.rel (0) target = $region21
    $region20: #{tpu_custom_call.1} parent=1 // pred_region
      %65 = vsyncadd [#allocation8], 0
      %s67 = sshll.u32 %s4, 4
      %s68 = int_to_ptr.hbm [resolvable:$true] %s67
      %s69 = sshll.u32 [#allocation9], 4
      %s70 = int_to_ptr.vmem [resolvable:$true] %s69
      %72 = dma.hbm_to_vmem [thread:$0]  %s68, 128, %s70, [#allocation8]
    $region21: #{tpu_custom_call.1} parent=1 // pred_fallthru
      _
    // Predicated region
    $region22: #{tpu_custom_call.1} parent=1 // pred_check
      _
    $region23: #{tpu_custom_call.1} parent=1 // pred_check_branch
      %74 = sbr.rel (0) target = $region25
    $region24: #{tpu_custom_call.1} parent=1 // pred_region
      %76 = vsyncadd [#allocation11], 0
      %s78 = sshll.u32 %s5, 4
      %s79 = int_to_ptr.hbm [resolvable:$true] %s78
      %s80 = sshll.u32 [#allocation10], 4
      %s81 = int_to_ptr.vmem [resolvable:$true] %s80
      %83 = dma.hbm_to_vmem [thread:$0]  %s79, 128, %s81, [#allocation11]
    $region25: #{tpu_custom_call.1} parent=1 // pred_fallthru
      _
    // Predicated region
    $region26: #{tpu_custom_call.1} parent=1 // pred_check
      _
    $region27: #{tpu_custom_call.1} parent=1 // pred_check_branch
      %85 = sbr.rel (0) target = $region29
    $region28: #{tpu_custom_call.1} parent=1 // pred_region
      %87 = vsyncadd [#allocation11], 0
      %s89 = sshll.u32 %s6, 4
      %s90 = int_to_ptr.hbm [resolvable:$true] %s89
      %s91 = sshll.u32 [#allocation12], 4
      %s92 = int_to_ptr.vmem [resolvable:$true] %s91
      %94 = dma.hbm_to_vmem [thread:$0]  %s90, 128, %s92, [#allocation11]
    $region29: #{tpu_custom_call.1} parent=1 // pred_fallthru
      _
    // Predicated region
    $region30: #{tpu_custom_call.1} parent=1 // pred_check
      _
    $region31: #{tpu_custom_call.1} parent=1 // pred_check_branch
      %96 = sbr.rel (0) target = $region33
    $region32: #{tpu_custom_call.1} parent=1 // pred_region
      %98 = vsyncadd [#allocation14], 0
      %s100 = sshll.u32 %s7, 4
      %s101 = int_to_ptr.hbm [resolvable:$true] %s100
      %s102 = sshll.u32 [#allocation13], 4
      %s103 = int_to_ptr.vmem [resolvable:$true] %s102
      %105 = dma.hbm_to_vmem [thread:$0]  %s101, 128, %s103, [#allocation14]
    $region33: #{tpu_custom_call.1} parent=1 // pred_fallthru
      _
    // Predicated region
    $region34: #{tpu_custom_call.1} parent=1 // pred_check
      _
    $region35: #{tpu_custom_call.1} parent=1 // pred_check_branch
      %107 = sbr.rel (0) target = $region37
    $region36: #{tpu_custom_call.1} parent=1 // pred_region
      %109 = dma.done [#allocation3], 128
    $region37: #{tpu_custom_call.1} parent=1 // pred_fallthru
      _
    // Predicated region
    $region38: #{tpu_custom_call.1} parent=1 // pred_check
      _
    $region39: #{tpu_custom_call.1} parent=1 // pred_check_branch
      %111 = sbr.rel (0) target = $region41
    $region40: #{tpu_custom_call.1} parent=1 // pred_region
      %113 = dma.done [#allocation5], 128
    $region41: #{tpu_custom_call.1} parent=1 // pred_fallthru
      _
    // Predicated region
    $region42: #{tpu_custom_call.1} parent=1 // pred_check
      _
    $region43: #{tpu_custom_call.1} parent=1 // pred_check_branch
      %115 = sbr.rel (0) target = $region45
    $region44: #{tpu_custom_call.1} parent=1 // pred_region
      %117 = dma.done [#allocation5], 128
    $region45: #{tpu_custom_call.1} parent=1 // pred_fallthru
      _
    // Predicated region
    $region46: #{tpu_custom_call.1} parent=1 // pred_check
      _
    $region47: #{tpu_custom_call.1} parent=1 // pred_check_branch
      %119 = sbr.rel (0) target = $region49
    $region48: #{tpu_custom_call.1} parent=1 // pred_region
      %121 = dma.done [#allocation8], 128
    $region49: #{tpu_custom_call.1} parent=1 // pred_fallthru
      _
    // Predicated region
    $region50: #{tpu_custom_call.1} parent=1 // pred_check
      _
    $region51: #{tpu_custom_call.1} parent=1 // pred_check_branch
      %123 = sbr.rel (0) target = $region53
    $region52: #{tpu_custom_call.1} parent=1 // pred_region
      %125 = dma.done [#allocation8], 128
    $region53: #{tpu_custom_call.1} parent=1 // pred_fallthru
      _
    // Predicated region
    $region54: #{tpu_custom_call.1} parent=1 // pred_check
      _
    $region55: #{tpu_custom_call.1} parent=1 // pred_check_branch
      %127 = sbr.rel (0) target = $region57
    $region56: #{tpu_custom_call.1} parent=1 // pred_region
      %129 = dma.done [#allocation11], 128
    $region57: #{tpu_custom_call.1} parent=1 // pred_fallthru
      _
    // Predicated region
    $region58: #{tpu_custom_call.1} parent=1 // pred_check
      _
    $region59: #{tpu_custom_call.1} parent=1 // pred_check_branch
      %131 = sbr.rel (0) target = $region61
    $region60: #{tpu_custom_call.1} parent=1 // pred_region
      %133 = dma.done [#allocation11], 128
    $region61: #{tpu_custom_call.1} parent=1 // pred_fallthru
      _
    // Predicated region
    $region62: #{tpu_custom_call.1} parent=1 // pred_check
      _
    $region63: #{tpu_custom_call.1} parent=1 // pred_check_branch
      %135 = sbr.rel (0) target = $region65
    $region64: #{tpu_custom_call.1} parent=1 // pred_region
      %137 = dma.done [#allocation14], 128
    $region65: #{tpu_custom_call.1} parent=1 // pred_fallthru
      _
    %v138 = vld [vmem:[#allocation2] sm:$0xff]
    %v139 = vld [vmem:[#allocation4] sm:$0xff]
    %v140 = vld [vmem:[#allocation6] sm:$0xff]
    %v141 = vld [vmem:[#allocation7] sm:$0xff]
    %v142 = vld [vmem:[#allocation9] sm:$0xff]
    %v143 = vld [vmem:[#allocation10] sm:$0xff]
    %v144 = vld [vmem:[#allocation12] sm:$0xff]
    %v145 = vld [vmem:[#allocation13] sm:$0xff]
    %v146 = vmul.f32 %v138, %v139
    %v147 = vmul.f32 %v142, %v143
    %v148 = vadd.f32 %v146, %v147
    %vm149 = vcmask 261120
    %v150 = vsel %vm149, %v148, 0.0
    %151 = vadd.xlane.f32.xlu0 %v150
    %v152 = vpop.xlane.xlu0 %151
    %v153 = vmul.f32 %v138, %v138
    %v154 = vmul.f32 %v142, %v142
    %v155 = vadd.f32 %v153, %v154
    %v156 = vsel %vm149, %v155, 0.0
    %157 = vadd.xlane.f32.xlu0 %v156
    %v158 = vpop.xlane.xlu0 %157
    %v159 = vmul.f32 %v139, %v139
    %v160 = vmul.f32 %v143, %v143
    %v161 = vadd.f32 %v159, %v160
    %v162 = vsel %vm149, %v161, 0.0
    %163 = vadd.xlane.f32.xlu0 %v162
    %v164 = vpop.xlane.xlu0 %163
    %v165 = vmul.f32 %v158, %v164
    %v166 = vmax.f32 %v165, 1e-16
    %v167 = vrsqrt.pop %v166
    %v168 = vmul.f32 %v167, %v166
    %v169 = vmul.f32 %v168, %v167
    %v170 = vmul.f32 0.5, %v169
    %v171 = vsub.f32 1.5, %v170
    %v172 = vmul.f32 %v167, %v171
    %vm173 = vweird.f32 %v166
    %vm174 = vweird.f32 %v167
    %vm175 = vmor %vm173, %vm174
    %v176 = vsel %vm175, %v167, %v172
    %v177 = vmul.f32 %v152, %v176
    %v178 = vmax.f32 %v177, -1.0
    %v179 = vmin.f32 %v178, 1.0
    %v180 = vadd.f32 %v179, 1.0
    %v181 = vmul.f32 %v180, 0.5
    %v182 = vlog2.pop %v181
    %v183 = vmul.f32 %v182, 0.6931472
    %v184 = vsub.f32 0.0, %v183
    %v185 = vmul.f32 %v140, %v141
    %v186 = vmul.f32 %v144, %v145
    %v187 = vadd.f32 %v185, %v186
    %v188 = vsel %vm149, %v187, 0.0
    %189 = vadd.xlane.f32.xlu0 %v188
    %v190 = vpop.xlane.xlu0 %189
    %v191 = vmul.f32 %v140, %v140
    %v192 = vmul.f32 %v144, %v144
    %v193 = vadd.f32 %v191, %v192
    %v194 = vsel %vm149, %v193, 0.0
    %195 = vadd.xlane.f32.xlu0 %v194
    %v196 = vpop.xlane.xlu0 %195
    %v197 = vmul.f32 %v141, %v141
    %v198 = vmul.f32 %v145, %v145
    %v199 = vadd.f32 %v197, %v198
    %v200 = vsel %vm149, %v199, 0.0
    %201 = vadd.xlane.f32.xlu0 %v200
    %v202 = vpop.xlane.xlu0 %201
    %v203 = vmul.f32 %v196, %v202
    %v204 = vmax.f32 %v203, 1e-16
    %v205 = vrsqrt.pop %v204
    %v206 = vmul.f32 %v205, %v204
    %v207 = vmul.f32 %v206, %v205
    %v208 = vmul.f32 0.5, %v207
    %v209 = vsub.f32 1.5, %v208
    %v210 = vmul.f32 %v205, %v209
    %vm211 = vweird.f32 %v204
    %vm212 = vweird.f32 %v205
    %vm213 = vmor %vm211, %vm212
    %v214 = vsel %vm213, %v205, %v210
    %v215 = vmul.f32 %v190, %v214
    %v216 = vmax.f32 %v215, -1.0
    %v217 = vmin.f32 %v216, 1.0
    %v218 = vadd.f32 %v217, 1.0
    %v219 = vmul.f32 %v218, 0.5
    %v220 = vlog2.pop %v219
    %v221 = vmul.f32 %v220, 0.6931472
    %v222 = vsub.f32 0.0, %v221
    %v223 = vmul.f32 %v222, 0.5
    %v224 = vmax.f32 %v184, %v223
    %v225 = vsub.f32 0.0, %v224
    %v226 = vmul.f32 %v225, 1.442695
    %v227 = vpow.pop %v226
    %v228 = vsub.f32 1.0, %v227
    %v229 = vmax.f32 %v228, 1e-10
    %v230 = vmin.f32 %v229, 1.0
    %v231 = vlog2.pop %v230
    %v232 = vmul.f32 %v231, 0.6931472
    %v233 = vsub.f32 %v232, %v225
    %vm234 = vcmask 7168
    %235 = vst.msk [vmem:[%s8] sm:$0xff] %vm234, %v233
    // Predicated region
    $region66: #{tpu_custom_call.1} parent=1 // pred_check
      _
    $region67: #{tpu_custom_call.1} parent=1 // pred_check_branch
      %237 = sbr.rel (0) target = $region69
    $region68: #{tpu_custom_call.1} parent=1 // pred_region
      _
    $region69: #{tpu_custom_call.1} parent=1 // pred_fallthru
      _
    // Predicated region
    $region70: #{tpu_custom_call.1} parent=1 // pred_check
      _
    $region71: #{tpu_custom_call.1} parent=1 // pred_check_branch
      %239 = sbr.rel (0) target = $region73
    $region72: #{tpu_custom_call.1} parent=1 // pred_region
      _
    $region73: #{tpu_custom_call.1} parent=1 // pred_fallthru
      _
    %240 = vsyncpa [#allocation3], 1
    %241 = vsyncpa [#allocation5], 1
    %242 = vsyncpa [#allocation8], 1
    %243 = vsyncpa [#allocation11], 1
    %244 = vsyncpa [#allocation14], 1

</llo_original>
